<compile_context>
chip_gen: v6e
topology: v6e:2x2x1
jax: 0.10.0
libtpu: 0.0.40
codegen_flags: <defaults>
</compile_context>

<pallas_src>
import jax
import jax.numpy as jnp
from jax import lax
from jax.experimental import pallas as pl
from jax.experimental.pallas import tpu as pltpu

# (((1,), (1,)), ((), ())): contract both operands' last dim  ==  A @ B^T.
_NT_DIMS = (((1,), (1,)), ((), ()))


def _mlp_kernel(x_ref, *refs):
    """Fused MLP on one row tile, computed in a transposed (features, rows) layout.

    refs = (W0, b0, W1, b1, ..., W_{L-1}, b_{L-1}, out_ref)
    W_i are torch-native (out_i, in_i) bf16; b_i are (out_i, 1) f32.
    out_ref is the lane-dense (Dout, row_tile) f32 tile.
    """
    out_ref = refs[-1]
    wb = refs[:-1]
    n_layers = len(wb) // 2

    # f32 x tile -> bf16 on the VPU (no separate wrapper-side HBM cast pass).
    x = x_ref[...].astype(jnp.bfloat16)                       # (row_tile, F)

    # Layer 0: W0 @ x^T via an NT dot_general.  The result is already
    # (N0, row_tile) -- rows live on the 128-lane axis from here on, no big
    # materialized transpose of x, full use of the MXU output columns.
    acc = lax.dot_general(wb[0][...], x, _NT_DIMS,
                          preferred_element_type=jnp.float32) + wb[1][...]

    for i in range(1, n_layers):
        # Bias-add / ReLU on the f32 accumulator (lane-dense); bf16 back to MXU.
        h = jnp.maximum(acc, 0.0).astype(jnp.bfloat16)        # (N_{i-1}, row_tile)
        acc = jnp.dot(wb[2 * i][...], h,
                      preferred_element_type=jnp.float32) + wb[2 * i + 1][...]

    # Already (Dout, row_tile): lane-dense unmasked stores, no epilogue transpose.
    # NOTE: padded rows of an edge tile hold garbage but only see matmul /
    # max / cast (no traps); their output lanes are masked off by Pallas.
    out_ref[...] = acc.astype(out_ref.dtype)


def _round_up(x, m):
    return ((x + m - 1) // m) * m


def _num_tensorcores():
    """2 on v7x-class chips (2 TensorCores/chip), else 1.  Best-effort."""
    try:
        kind = jax.devices()[0].device_kind.lower()
    except Exception:
        return 1
    return 2 if ("v7" in kind or "tpu7" in kind) else 1


def _choose_row_tile(m_rows, max_tile, num_tc):
    """Pick the row tile (the lane axis of the transposed dataflow).

    * Single-TC chips (v5e/v6e): one full-extent block whenever M fits in
      max_tile -- splitting for 'megacore' only adds per-step overhead.
    * v7x (2 TCs): an even number of equal, multiple-of-128 tiles so the
      "parallel" grid axis shards evenly across both TensorCores.
    * Tiles are multiples of 128 so the (Dout, row_tile) output block stays
      legal and lane-dense; a full-extent block is always legal.
    """
    max_tile = max(128, (max_tile // 128) * 128)
    if m_rows <= 128 or (num_tc <= 1 and m_rows <= max_tile):
        return m_rows                                   # single full-extent block
    n_tiles = max(num_tc, pl.cdiv(m_rows, max_tile))
    n_tiles = _round_up(n_tiles, num_tc)
    tile = _round_up(pl.cdiv(m_rows, n_tiles), 128)
    return min(tile, _round_up(m_rows, 128))


def eig_mlp_forward(x, weights, biases, *, max_row_tile=4096):
    """x: (B, S, D, D) float32; weights[i]: (out_i, in_i); biases[i]: (out_i,).

    Returns (B, S, Dout) float32 with Dout = weights[-1].shape[0].
    """
    B, S, D, _ = x.shape
    F = D * D
    M = B * S
    Dout = weights[-1].shape[0]

    # Row-major flatten is free; x stays f32 -- the bf16 cast happens in-kernel.
    x2d = x.reshape(M, F)

    num_tc = _num_tensorcores()
    row_tile = _choose_row_tile(M, max_row_tile, num_tc)
    grid = (pl.cdiv(M, row_tile),)

    # If the trace ever shows the x DMA exposed at very large tiles, add
    # pipeline_mode=pl.Buffered(3) to this spec only (never the weights).
    in_specs = [pl.BlockSpec((row_tile, F), lambda i: (i, 0))]
    flat_params = []
    for w, b in zip(weights, biases):
        # Whole (tiny) weight/bias tensors with constant index maps: blocks
        # stay resident in VMEM across grid steps (no re-DMA).
        in_specs.append(pl.BlockSpec(w.shape, lambda i: (0, 0)))
        in_specs.append(pl.BlockSpec((b.shape[0], 1), lambda i: (0, 0)))
        flat_params.append(w.astype(jnp.bfloat16))                 # (out, in) bf16
        flat_params.append(b.astype(jnp.float32).reshape(-1, 1))   # (out, 1) f32

    # Lane-dense transposed output: (Dout, M), block (Dout, row_tile).
    out_specs = pl.BlockSpec((Dout, row_tile), lambda i: (0, i))

    flops = 2 * M * sum(int(w.shape[0]) * int(w.shape[1]) for w in weights)
    bytes_accessed = (
        M * F * 4                                    # f32 x stream
        + M * Dout * 4                               # f32 (Dout, M) output
        + sum(int(w.size) * 2 for w in weights)      # bf16 weights
        + sum(int(b.size) * 4 for b in biases)       # f32 biases
    )

    out_t = pl.pallas_call(
        _mlp_kernel,
        out_shape=jax.ShapeDtypeStruct((Dout, M), jnp.float32),
        grid=grid,
        in_specs=in_specs,
        out_specs=out_specs,
        compiler_params=pltpu.CompilerParams(
            dimension_semantics=("parallel",)),
        cost_estimate=pl.CostEstimate(
            flops=flops, transcendentals=0, bytes_accessed=bytes_accessed),
    )(x2d, *flat_params)

    # Tiny (Dout, M) -> (B, S, Dout) relayout; under jit this fuses into the
    # consumer instead of being a standalone HBM pass.
    return out_t.T.reshape(B, S, Dout)


def init_eig_mlp_params(key, matrix_dimension, input_features, hidden_layers,
                        n_neurons):
    """Deterministic init matching nn.Linear: weights (out, in), biases (out,)."""
    dims = [input_features] + [n_neurons] * hidden_layers + [matrix_dimension]
    weights, biases = [], []
    for i in range(len(dims) - 1):
        fan_in, fan_out = dims[i], dims[i + 1]
        key, kw, kb = jax.random.split(key, 3)
        bound = 1.0 / jnp.sqrt(fan_in)
        weights.append(
            jax.random.uniform(kw, (fan_out, fan_in), jnp.float32, -bound, bound))
        biases.append(
            jax.random.uniform(kb, (fan_out,), jnp.float32, -bound, bound))
    return weights, biases


def _reference_forward(x, weights, biases):
    """Pure-JAX reference using the same bf16-operand / f32-accumulate recipe."""
    B, S, D, _ = x.shape
    h = x.reshape(B, S, D * D).astype(jnp.bfloat16)
    n = len(weights)
    for i, (w, b) in enumerate(zip(weights, biases)):
        acc = jnp.dot(h, w.astype(jnp.bfloat16).T,
                      preferred_element_type=jnp.float32) + b
        if i < n - 1:
            h = jnp.maximum(acc, 0.0).astype(jnp.bfloat16)
        else:
            return acc


if __name__ == "__main__":
    # Small shapes consistent with the module:
    #   matrix_dimension D = 8 -> input_features = D*D = 64
    #   hidden_layers = 3, n_neurons = 32
    D = 8
    INPUT_FEATURES = D * D
    HIDDEN_LAYERS = 3
    N_NEURONS = 32

    key = jax.random.PRNGKey(0)
    key, kp = jax.random.split(key)
    weights, biases = init_eig_mlp_params(
        kp, D, INPUT_FEATURES, HIDDEN_LAYERS, N_NEURONS)

    # Case 1: tiny (B=2, S=4) -> M=8, single full-extent block, grid = 1.
    key, kx1 = jax.random.split(key)
    x1 = jax.random.normal(kx1, (2, 4, D, D), jnp.float32)
    out1 = jax.block_until_ready(eig_mlp_forward(x1, weights, biases))
    ref1 = _reference_forward(x1, weights, biases)
    assert out1.shape == (2, 4, D), out1.shape
    assert jnp.allclose(out1, ref1, atol=1e-2, rtol=1e-2), "mismatch (case 1)"

    # Case 2: M = 400 with a forced 128-row tile -> grid = 4, exercising the
    # partial edge block (padded reads / masked writes) and multi-step pipeline.
    key, kx2 = jax.random.split(key)
    x2 = jax.random.normal(kx2, (2, 200, D, D), jnp.float32)
    out2 = jax.block_until_ready(
        eig_mlp_forward(x2, weights, biases, max_row_tile=128))
    ref2 = _reference_forward(x2, weights, biases)
    assert out2.shape == (2, 200, D), out2.shape
    assert jnp.allclose(out2, ref2, atol=1e-2, rtol=1e-2), "mismatch (case 2)"

    # Case 3: same input through the default large-tile path: one full-extent
    # block on single-TC chips (v5e/v6e), two even tiles on v7x.
    out3 = jax.block_until_ready(eig_mlp_forward(x2, weights, biases))
    assert out3.shape == (2, 200, D), out3.shape
    assert jnp.allclose(out3, ref2, atol=1e-2, rtol=1e-2), "mismatch (case 3)"

    print("KERNEL_OK")
</pallas_src>

<mosaic_0001>
module attributes {stable_mosaic.version = 11 : i64} {
  func.func @_mlp_kernel(%arg0: i32, %arg1: memref<8x64xf32, #tpu.memory_space<vmem>>, %arg2: memref<32x64xbf16, #tpu.memory_space<vmem>>, %arg3: memref<32x1xf32, #tpu.memory_space<vmem>>, %arg4: memref<32x32xbf16, #tpu.memory_space<vmem>>, %arg5: memref<32x1xf32, #tpu.memory_space<vmem>>, %arg6: memref<32x32xbf16, #tpu.memory_space<vmem>>, %arg7: memref<32x1xf32, #tpu.memory_space<vmem>>, %arg8: memref<8x32xbf16, #tpu.memory_space<vmem>>, %arg9: memref<8x1xf32, #tpu.memory_space<vmem>>, %arg10: memref<8x8xf32, #tpu.memory_space<vmem>>) attributes {dimension_semantics = [#tpu.dimension_semantics<parallel>], iteration_bounds = array<i64: 1>, scalar_prefetch = 0 : i64, scratch_operands = 0 : i64, tpu.core_type = #tpu.core_type<tc>, window_params = [{transform_indices = @transform_0, window_bounds = array<i64: 8, 64>}, {pipeline_mode = #tpu.pipeline_mode<synchronous>, transform_indices = @transform_1, window_bounds = array<i64: 32, 64>}, {pipeline_mode = #tpu.pipeline_mode<synchronous>, transform_indices = @transform_2, window_bounds = array<i64: 32, 1>}, {pipeline_mode = #tpu.pipeline_mode<synchronous>, transform_indices = @transform_3, window_bounds = array<i64: 32, 32>}, {pipeline_mode = #tpu.pipeline_mode<synchronous>, transform_indices = @transform_4, window_bounds = array<i64: 32, 1>}, {pipeline_mode = #tpu.pipeline_mode<synchronous>, transform_indices = @transform_5, window_bounds = array<i64: 32, 32>}, {pipeline_mode = #tpu.pipeline_mode<synchronous>, transform_indices = @transform_6, window_bounds = array<i64: 32, 1>}, {pipeline_mode = #tpu.pipeline_mode<synchronous>, transform_indices = @transform_7, window_bounds = array<i64: 8, 32>}, {pipeline_mode = #tpu.pipeline_mode<synchronous>, transform_indices = @transform_8, window_bounds = array<i64: 8, 1>}, {transform_indices = @transform_9, window_bounds = array<i64: 8, 8>}]} {
    %c0 = arith.constant 0 : index
    %c0_0 = arith.constant 0 : index
    %0 = vector.load %arg1[%c0, %c0_0] : memref<8x64xf32, #tpu.memory_space<vmem>>, vector<8x64xf32>
    %1 = arith.truncf %0 : vector<8x64xf32> to vector<8x64xbf16>
    %c0_1 = arith.constant 0 : index
    %c0_2 = arith.constant 0 : index
    %2 = vector.load %arg2[%c0_1, %c0_2] : memref<32x64xbf16, #tpu.memory_space<vmem>>, vector<32x64xbf16>
    %cst = arith.constant dense<0.000000e+00> : vector<32x8xf32>
    %3 = tpu.matmul %2, %1, %cst {dimension_numbers = #tpu.dot_dimension_numbers<[1], [1], [0], [0], [0, 0, 1, 0], [], []>} : vector<32x64xbf16>, vector<8x64xbf16>, vector<32x8xf32> -> vector<32x8xf32>
    %c0_3 = arith.constant 0 : index
    %c0_4 = arith.constant 0 : index
    %4 = vector.load %arg3[%c0_3, %c0_4] : memref<32x1xf32, #tpu.memory_space<vmem>>, vector<32x1xf32>
    %5 = vector.broadcast %4 : vector<32x1xf32> to vector<32x8xf32>
    %6 = arith.addf %3, %5 : vector<32x8xf32>
    %cst_5 = arith.constant 0.000000e+00 : f32
    %7 = vector.broadcast %cst_5 : f32 to vector<32x8xf32>
    %8 = arith.maximumf %6, %7 : vector<32x8xf32>
    %9 = arith.truncf %8 : vector<32x8xf32> to vector<32x8xbf16>
    %c0_6 = arith.constant 0 : index
    %c0_7 = arith.constant 0 : index
    %10 = vector.load %arg4[%c0_6, %c0_7] : memref<32x32xbf16, #tpu.memory_space<vmem>>, vector<32x32xbf16>
    %cst_8 = arith.constant dense<0.000000e+00> : vector<32x8xf32>
    %11 = tpu.matmul %10, %9, %cst_8 {dimension_numbers = #tpu.dot_dimension_numbers<[1], [0], [0], [1], [0, 0, 1, 1], [], []>} : vector<32x32xbf16>, vector<32x8xbf16>, vector<32x8xf32> -> vector<32x8xf32>
    %c0_9 = arith.constant 0 : index
    %c0_10 = arith.constant 0 : index
    %12 = vector.load %arg5[%c0_9, %c0_10] : memref<32x1xf32, #tpu.memory_space<vmem>>, vector<32x1xf32>
    %13 = vector.broadcast %12 : vector<32x1xf32> to vector<32x8xf32>
    %14 = arith.addf %11, %13 : vector<32x8xf32>
    %cst_11 = arith.constant 0.000000e+00 : f32
    %15 = vector.broadcast %cst_11 : f32 to vector<32x8xf32>
    %16 = arith.maximumf %14, %15 : vector<32x8xf32>
    %17 = arith.truncf %16 : vector<32x8xf32> to vector<32x8xbf16>
    %c0_12 = arith.constant 0 : index
    %c0_13 = arith.constant 0 : index
    %18 = vector.load %arg6[%c0_12, %c0_13] : memref<32x32xbf16, #tpu.memory_space<vmem>>, vector<32x32xbf16>
    %cst_14 = arith.constant dense<0.000000e+00> : vector<32x8xf32>
    %19 = tpu.matmul %18, %17, %cst_14 {dimension_numbers = #tpu.dot_dimension_numbers<[1], [0], [0], [1], [0, 0, 1, 1], [], []>} : vector<32x32xbf16>, vector<32x8xbf16>, vector<32x8xf32> -> vector<32x8xf32>
    %c0_15 = arith.constant 0 : index
    %c0_16 = arith.constant 0 : index
    %20 = vector.load %arg7[%c0_15, %c0_16] : memref<32x1xf32, #tpu.memory_space<vmem>>, vector<32x1xf32>
    %21 = vector.broadcast %20 : vector<32x1xf32> to vector<32x8xf32>
    %22 = arith.addf %19, %21 : vector<32x8xf32>
    %cst_17 = arith.constant 0.000000e+00 : f32
    %23 = vector.broadcast %cst_17 : f32 to vector<32x8xf32>
    %24 = arith.maximumf %22, %23 : vector<32x8xf32>
    %25 = arith.truncf %24 : vector<32x8xf32> to vector<32x8xbf16>
    %c0_18 = arith.constant 0 : index
    %c0_19 = arith.constant 0 : index
    %26 = vector.load %arg8[%c0_18, %c0_19] : memref<8x32xbf16, #tpu.memory_space<vmem>>, vector<8x32xbf16>
    %cst_20 = arith.constant dense<0.000000e+00> : vector<8x8xf32>
    %27 = tpu.matmul %26, %25, %cst_20 {dimension_numbers = #tpu.dot_dimension_numbers<[1], [0], [0], [1], [0, 0, 1, 1], [], []>} : vector<8x32xbf16>, vector<32x8xbf16>, vector<8x8xf32> -> vector<8x8xf32>
    %c0_21 = arith.constant 0 : index
    %c0_22 = arith.constant 0 : index
    %28 = vector.load %arg9[%c0_21, %c0_22] : memref<8x1xf32, #tpu.memory_space<vmem>>, vector<8x1xf32>
    %29 = vector.broadcast %28 : vector<8x1xf32> to vector<8x8xf32>
    %30 = arith.addf %27, %29 : vector<8x8xf32>
    %c0_23 = arith.constant 0 : index
    %c0_24 = arith.constant 0 : index
    %31 = vector.load %arg10[%c0_23, %c0_24] : memref<8x8xf32, #tpu.memory_space<vmem>>, vector<8x8xf32>
    tpu.vector_store %arg10[%c0_23, %c0_24], %30 {strides = array<i32>} : memref<8x8xf32, #tpu.memory_space<vmem>>, vector<8x8xf32>,
    return
  }
  func.func @transform_0(%arg0: i32) -> (i32, i32) {
    %c0_i32 = arith.constant 0 : i32
    %c0_i32_0 = arith.constant 0 : i32
    return %arg0, %c0_i32 : i32, i32
  }
  func.func @transform_1(%arg0: i32) -> (i32, i32) {
    %c0_i32 = arith.constant 0 : i32
    %c0_i32_0 = arith.constant 0 : i32
    %c0_i32_1 = arith.constant 0 : i32
    return %c0_i32, %c0_i32_0 : i32, i32
  }
  func.func @transform_2(%arg0: i32) -> (i32, i32) {
    %c0_i32 = arith.constant 0 : i32
    %c0_i32_0 = arith.constant 0 : i32
    %c0_i32_1 = arith.constant 0 : i32
    return %c0_i32, %c0_i32_0 : i32, i32
  }
  func.func @transform_3(%arg0: i32) -> (i32, i32) {
    %c0_i32 = arith.constant 0 : i32
    %c0_i32_0 = arith.constant 0 : i32
    %c0_i32_1 = arith.constant 0 : i32
    return %c0_i32, %c0_i32_0 : i32, i32
  }
  func.func @transform_4(%arg0: i32) -> (i32, i32) {
    %c0_i32 = arith.constant 0 : i32
    %c0_i32_0 = arith.constant 0 : i32
    %c0_i32_1 = arith.constant 0 : i32
    return %c0_i32, %c0_i32_0 : i32, i32
  }
  func.func @transform_5(%arg0: i32) -> (i32, i32) {
    %c0_i32 = arith.constant 0 : i32
    %c0_i32_0 = arith.constant 0 : i32
    %c0_i32_1 = arith.constant 0 : i32
    return %c0_i32, %c0_i32_0 : i32, i32
  }
  func.func @transform_6(%arg0: i32) -> (i32, i32) {
    %c0_i32 = arith.constant 0 : i32
    %c0_i32_0 = arith.constant 0 : i32
    %c0_i32_1 = arith.constant 0 : i32
    return %c0_i32, %c0_i32_0 : i32, i32
  }
  func.func @transform_7(%arg0: i32) -> (i32, i32) {
    %c0_i32 = arith.constant 0 : i32
    %c0_i32_0 = arith.constant 0 : i32
    %c0_i32_1 = arith.constant 0 : i32
    return %c0_i32, %c0_i32_0 : i32, i32
  }
  func.func @transform_8(%arg0: i32) -> (i32, i32) {
    %c0_i32 = arith.constant 0 : i32
    %c0_i32_0 = arith.constant 0 : i32
    %c0_i32_1 = arith.constant 0 : i32
    return %c0_i32, %c0_i32_0 : i32, i32
  }
  func.func @transform_9(%arg0: i32) -> (i32, i32) {
    %c0_i32 = arith.constant 0 : i32
    %c0_i32_0 = arith.constant 0 : i32
    return %c0_i32, %arg0 : i32, i32
  }
}

</mosaic_0001>

<llo_original>
// kernel: tpu_custom_call.1
$region0: #{tpu_custom_call.1}
  #allocation0 [shape = 'u32[]', space=smem, size = 0x4, offset = 0x4, fixed_abs, tag = 'smem constant byte address 0x4 - core index']
  #allocation1 [shape = 'u32[144,128]{1,0:T(1,128)}', space=vmem, size = 0x12000, scoped, tag = 'internal scratch']
  %s0 = inlined_call_operand.vmem [shape: f32[8,64], index: 0, kind: input, shape index: {}]
  %s1 = inlined_call_operand.vmem [shape: bf16[32,64], index: 1, kind: input, shape index: {}]
  %s2 = inlined_call_operand.vmem [shape: f32[32,1], index: 2, kind: input, shape index: {}]
  %s3 = inlined_call_operand.vmem [shape: bf16[32,32], index: 3, kind: input, shape index: {}]
  %s4 = inlined_call_operand.vmem [shape: f32[32,1], index: 4, kind: input, shape index: {}]
  %s5 = inlined_call_operand.vmem [shape: bf16[32,32], index: 5, kind: input, shape index: {}]
  %s6 = inlined_call_operand.vmem [shape: f32[32,1], index: 6, kind: input, shape index: {}]
  %s7 = inlined_call_operand.vmem [shape: bf16[8,32], index: 7, kind: input, shape index: {}]
  %s8 = inlined_call_operand.vmem [shape: f32[8,1], index: 8, kind: input, shape index: {}]
  %s9 = inlined_call_operand.hbm [shape: f32[8,8], index: 9, kind: output, shape index: {}]
  %s10 = sld [smem:[#allocation0]]
  $region46: #{tpu_custom_call.1} parent=0
    _
  %s12 = ssub.s32 1, %s10
  %s13 = scalar_select 0, %s12, %s10
  $region1: #{tpu_custom_call.1} parent=0
    #allocation2 [shape = 'u8[4096]{0}', space=vmem, size = 0x1000, scoped, tag = 'output window, operand 0, single buffered']
    #allocation3 [shape = 's32[1]{0}', space=sflag, size = 0x4, scoped, tag = 'scoped memory for tpu_custom_call.1']
    %14 = vsyncpa [#allocation3], 0
    // Predicated region
    $region2: #{tpu_custom_call.1} parent=1 // pred_check
      _
    $region3: #{tpu_custom_call.1} parent=1 // pred_check_branch
      %16 = sbr.rel (0) target = $region5
    $region4: #{tpu_custom_call.1} parent=1 // pred_region
      _
    $region5: #{tpu_custom_call.1} parent=1 // pred_fallthru
      _
    // Predicated region
    $region6: #{tpu_custom_call.1} parent=1 // pred_check
      _
    $region7: #{tpu_custom_call.1} parent=1 // pred_check_branch
      %18 = sbr.rel (0) target = $region9
    $region8: #{tpu_custom_call.1} parent=1 // pred_region
      _
    $region9: #{tpu_custom_call.1} parent=1 // pred_fallthru
      _
    // Predicated region
    $region10: #{tpu_custom_call.1} parent=1 // pred_check
      _
    $region11: #{tpu_custom_call.1} parent=1 // pred_check_branch
      %20 = sbr.rel (0) target = $region13
    $region12: #{tpu_custom_call.1} parent=1 // pred_region
      _
    $region13: #{tpu_custom_call.1} parent=1 // pred_fallthru
      _
    // Predicated region
    $region14: #{tpu_custom_call.1} parent=1 // pred_check
      _
    $region15: #{tpu_custom_call.1} parent=1 // pred_check_branch
      %22 = sbr.rel (0) target = $region17
    $region16: #{tpu_custom_call.1} parent=1 // pred_region
      _
    $region17: #{tpu_custom_call.1} parent=1 // pred_fallthru
      _
    // Predicated region
    $region18: #{tpu_custom_call.1} parent=1 // pred_check
      _
    $region19: #{tpu_custom_call.1} parent=1 // pred_check_branch
      %24 = sbr.rel (0) target = $region21
    $region20: #{tpu_custom_call.1} parent=1 // pred_region
      _
    $region21: #{tpu_custom_call.1} parent=1 // pred_fallthru
      _
    // Predicated region
    $region22: #{tpu_custom_call.1} parent=1 // pred_check
      _
    $region23: #{tpu_custom_call.1} parent=1 // pred_check_branch
      %26 = sbr.rel (0) target = $region25
    $region24: #{tpu_custom_call.1} parent=1 // pred_region
      _
    $region25: #{tpu_custom_call.1} parent=1 // pred_fallthru
      _
    // Predicated region
    $region26: #{tpu_custom_call.1} parent=1 // pred_check
      _
    $region27: #{tpu_custom_call.1} parent=1 // pred_check_branch
      %28 = sbr.rel (0) target = $region29
    $region28: #{tpu_custom_call.1} parent=1 // pred_region
      _
    $region29: #{tpu_custom_call.1} parent=1 // pred_fallthru
      _
    // Predicated region
    $region30: #{tpu_custom_call.1} parent=1 // pred_check
      _
    $region31: #{tpu_custom_call.1} parent=1 // pred_check_branch
      %30 = sbr.rel (0) target = $region33
    $region32: #{tpu_custom_call.1} parent=1 // pred_region
      _
    $region33: #{tpu_custom_call.1} parent=1 // pred_fallthru
      _
    // Predicated region
    $region34: #{tpu_custom_call.1} parent=1 // pred_check
      _
    $region35: #{tpu_custom_call.1} parent=1 // pred_check_branch
      %32 = sbr.rel (0) target = $region37
    $region36: #{tpu_custom_call.1} parent=1 // pred_region
      _
    $region37: #{tpu_custom_call.1} parent=1 // pred_fallthru
      _
    %v34 = vld [vmem:[%s0] sm:$0xff]
    %v35 = vpack.c.bf16 %v34, %v34
    %v36 = vld [vmem:[%s1] sm:$0xf]
    %v37 = vld [vmem:[%s1 + $0x4] sm:$0xf]
    %v38 = vld [vmem:[%s1 + $0x8] sm:$0xf]
    %v39 = vld [vmem:[%s1 + $0xc] sm:$0xf]
    %v40 = vld [vmem:[%s2] sm:$0xff]
    %v41 = vld [vmem:[%s2 + $0x8] sm:$0xff]
    %v42 = vld [vmem:[%s2 + $0x10] sm:$0xff]
    %v43 = vld [vmem:[%s2 + $0x18] sm:$0xff]
    %45 = vset.pattern.permute.xlu0 0
    %46 = vperm.xlu0 %45, %v40
    %v47 = vpop.permute.xlu0 %46
    %50 = vset.pattern.permute.xlu0 0
    %51 = vperm.xlu0 %50, %v41
    %v52 = vpop.permute.xlu0 %51
    %55 = vset.pattern.permute.xlu0 0
    %56 = vperm.xlu0 %55, %v42
    %v57 = vpop.permute.xlu0 %56
    %60 = vset.pattern.permute.xlu0 0
    %61 = vperm.xlu0 %60, %v43
    %v62 = vpop.permute.xlu0 %61
    %v68 = vunpack.c.l.b16 %v36
    %v69 = vunpack.c.l.b16 %v37
    %v70 = vunpack.c.l.b16 %v38
    %v71 = vunpack.c.l.b16 %v39
    %v72 = vpack.c.b16 %v69, %v68
    %v73 = vpack.c.b16 %v71, %v70
    %vm74 = vcmask 523264
    %v76 = vsel %vm74, %v72, 0
    %v79 = vsel %vm74, %v73, 0
    %v82 = vsel %vm74, %v35, 0
    %84 = vmatprep.subr.bf16.mxu0 0
    %85 = vmatpush1.bf16.xpose.msra.mxu0 0
    %86 = vmatprep.subr.bf16.mxu0 0
    %87 = vmatpush1.bf16.xpose.msra.mxu0 0
    %88 = vmatprep.subr.bf16.mxu0 0
    %89 = vmatpush1.bf16.xpose.msra.mxu0 0
    %90 = vmatprep.subr.bf16.mxu0 0
    %91 = vmatpush1.bf16.xpose.msra.mxu0 0
    %92 = vmatprep.subr.bf16.mxu0 0
    %93 = vmatpush1.bf16.xpose.msra.mxu0 0
    %94 = vmatprep.subr.bf16.mxu0 0
    %95 = vmatpush1.bf16.xpose.msra.mxu0 0
    %96 = vmatprep.subr.bf16.mxu0 0
    %97 = vmatpush1.bf16.xpose.msra.mxu0 0
    %98 = vmatprep.subr.bf16.mxu0 0
    %99 = vmatpush1.bf16.xpose.msra.mxu0 %v82
    %100 = vmatprep.subr.bf16.mxu0 0
    %101 = vmatpush2.bf16.xpose.msra.mxu0 0
    %102 = vmatprep.subr.bf16.mxu0 0
    %103 = vmatpush2.bf16.xpose.msra.mxu0 0
    %104 = vmatprep.subr.bf16.mxu0 0
    %105 = vmatpush2.bf16.xpose.msra.mxu0 0
    %106 = vmatprep.subr.bf16.mxu0 0
    %107 = vmatpush2.bf16.xpose.msra.mxu0 0
    %108 = vmatprep.subr.bf16.mxu0 0
    %109 = vmatpush2.bf16.xpose.msra.mxu0 0
    %110 = vmatprep.subr.bf16.mxu0 0
    %111 = vmatpush2.bf16.xpose.msra.mxu0 0
    %112 = vmatprep.subr.bf16.mxu0 0
    %113 = vmatpush2.bf16.xpose.msra.mxu0 0
    %114 = vmatprep.subr.bf16.mxu0 0
    %115 = vmatpush2.bf16.xpose.msra.mxu0 0
    %116 = vmatprep.mubr.bf16.mxu0 0
    %117 = vmatmul.mubr.bf16.gmra.mxu0 %v76
    %v118 = vpop.f32.mrf.mxu0
    %v119 = vadd.f32 %v47, %v118
    %v120 = vpop.f32.mrf.mxu0
    %v121 = vpop.f32.mrf.mxu0
    %v122 = vadd.f32 %v52, %v121
    %v123 = vpop.f32.mrf.mxu0
    %124 = vmatprep.mubr.bf16.mxu0 0
    %125 = vmatmul.mubr.bf16.gmra.mxu0 %v79
    %v126 = vpop.f32.mrf.mxu0
    %v127 = vadd.f32 %v57, %v126
    %v128 = vpop.f32.mrf.mxu0
    %v129 = vpop.f32.mrf.mxu0
    %v130 = vadd.f32 %v62, %v129
    %v131 = vpop.f32.mrf.mxu0
    %132 = vdwg.mxu0
    %v133 = vmax.f32 %v119, 0.0
    %v134 = vmax.f32 %v122, 0.0
    %v135 = vmax.f32 %v127, 0.0
    %v136 = vmax.f32 %v130, 0.0
    %v137 = vpack.c.bf16 %v134, %v133
    %v138 = vpack.c.bf16 %v136, %v135
    %v139 = vld [vmem:[%s3] sm:$0xf]
    %v140 = vld [vmem:[%s3 + $0x4] sm:$0xf]
    %v141 = vld [vmem:[%s3 + $0x8] sm:$0xf]
    %v142 = vld [vmem:[%s3 + $0xc] sm:$0xf]
    %v143 = vld [vmem:[%s4] sm:$0xff]
    %v144 = vld [vmem:[%s4 + $0x8] sm:$0xff]
    %v145 = vld [vmem:[%s4 + $0x10] sm:$0xff]
    %v146 = vld [vmem:[%s4 + $0x18] sm:$0xff]
    %148 = vset.pattern.permute.xlu0 0
    %149 = vperm.xlu0 %148, %v143
    %v150 = vpop.permute.xlu0 %149
    %153 = vset.pattern.permute.xlu0 0
    %154 = vperm.xlu0 %153, %v144
    %v155 = vpop.permute.xlu0 %154
    %158 = vset.pattern.permute.xlu0 0
    %159 = vperm.xlu0 %158, %v145
    %v160 = vpop.permute.xlu0 %159
    %163 = vset.pattern.permute.xlu0 0
    %164 = vperm.xlu0 %163, %v146
    %v165 = vpop.permute.xlu0 %164
    %v171 = vunpack.c.l.b16 %v139
    %v172 = vunpack.c.l.b16 %v140
    %v173 = vunpack.c.l.b16 %v141
    %v174 = vunpack.c.l.b16 %v142
    %v175 = vpack.c.b16 %v172, %v171
    %v176 = vpack.c.b16 %v174, %v173
    %vm177 = vcmask 261120
    %v179 = vsel %vm177, %v175, 0
    %v182 = vsel %vm177, %v176, 0
    %184 = vmatprep.subr.bf16.mxu0 0
    %185 = vmatpush1.bf16.msra.mxu0 0
    %186 = vmatprep.subr.bf16.mxu0 0
    %187 = vmatpush1.bf16.msra.mxu0 0
    %188 = vmatprep.subr.bf16.mxu0 0
    %189 = vmatpush1.bf16.msra.mxu0 0
    %190 = vmatprep.subr.bf16.mxu0 0
    %191 = vmatpush1.bf16.msra.mxu0 0
    %192 = vmatprep.subr.bf16.mxu0 0
    %193 = vmatpush1.bf16.msra.mxu0 0
    %194 = vmatprep.subr.bf16.mxu0 0
    %195 = vmatpush1.bf16.msra.mxu0 0
    %196 = vmatprep.subr.bf16.mxu0 0
    %197 = vmatpush1.bf16.msra.mxu0 %v138
    %198 = vmatprep.subr.bf16.mxu0 0
    %199 = vmatpush1.bf16.msra.mxu0 %v137
    %200 = vmatprep.subr.bf16.mxu0 0
    %201 = vmatpush2.bf16.msra.mxu0 0
    %202 = vmatprep.subr.bf16.mxu0 0
    %203 = vmatpush2.bf16.msra.mxu0 0
    %204 = vmatprep.subr.bf16.mxu0 0
    %205 = vmatpush2.bf16.msra.mxu0 0
    %206 = vmatprep.subr.bf16.mxu0 0
    %207 = vmatpush2.bf16.msra.mxu0 0
    %208 = vmatprep.subr.bf16.mxu0 0
    %209 = vmatpush2.bf16.msra.mxu0 0
    %210 = vmatprep.subr.bf16.mxu0 0
    %211 = vmatpush2.bf16.msra.mxu0 0
    %212 = vmatprep.subr.bf16.mxu0 0
    %213 = vmatpush2.bf16.msra.mxu0 0
    %214 = vmatprep.subr.bf16.mxu0 0
    %215 = vmatpush2.bf16.msra.mxu0 0
    %216 = vmatprep.mubr.bf16.mxu0 0
    %217 = vmatmul.mubr.bf16.gmra.mxu0 %v179
    %v218 = vpop.f32.mrf.mxu0
    %v219 = vadd.f32 %v150, %v218
    %v220 = vpop.f32.mrf.mxu0
    %v221 = vpop.f32.mrf.mxu0
    %v222 = vadd.f32 %v155, %v221
    %v223 = vpop.f32.mrf.mxu0
    %224 = vmatprep.mubr.bf16.mxu0 0
    %225 = vmatmul.mubr.bf16.gmra.mxu0 %v182
    %v226 = vpop.f32.mrf.mxu0
    %v227 = vadd.f32 %v160, %v226
    %v228 = vpop.f32.mrf.mxu0
    %v229 = vpop.f32.mrf.mxu0
    %v230 = vadd.f32 %v165, %v229
    %v231 = vpop.f32.mrf.mxu0
    %232 = vdwg.mxu0
    %v233 = vmax.f32 %v219, 0.0
    %v234 = vmax.f32 %v222, 0.0
    %v235 = vmax.f32 %v227, 0.0
    %v236 = vmax.f32 %v230, 0.0
    %v237 = vpack.c.bf16 %v234, %v233
    %v238 = vpack.c.bf16 %v236, %v235
    %v239 = vld [vmem:[%s5] sm:$0xf]
    %v240 = vld [vmem:[%s5 + $0x4] sm:$0xf]
    %v241 = vld [vmem:[%s5 + $0x8] sm:$0xf]
    %v242 = vld [vmem:[%s5 + $0xc] sm:$0xf]
    %v243 = vld [vmem:[%s6] sm:$0xff]
    %v244 = vld [vmem:[%s6 + $0x8] sm:$0xff]
    %v245 = vld [vmem:[%s6 + $0x10] sm:$0xff]
    %v246 = vld [vmem:[%s6 + $0x18] sm:$0xff]
    %248 = vset.pattern.permute.xlu0 0
    %249 = vperm.xlu0 %248, %v243
    %v250 = vpop.permute.xlu0 %249
    %253 = vset.pattern.permute.xlu0 0
    %254 = vperm.xlu0 %253, %v244
    %v255 = vpop.permute.xlu0 %254
    %258 = vset.pattern.permute.xlu0 0
    %259 = vperm.xlu0 %258, %v245
    %v260 = vpop.permute.xlu0 %259
    %263 = vset.pattern.permute.xlu0 0
    %264 = vperm.xlu0 %263, %v246
    %v265 = vpop.permute.xlu0 %264
    %v271 = vunpack.c.l.b16 %v239
    %v272 = vunpack.c.l.b16 %v240
    %v273 = vunpack.c.l.b16 %v241
    %v274 = vunpack.c.l.b16 %v242
    %v275 = vpack.c.b16 %v272, %v271
    %v276 = vpack.c.b16 %v274, %v273
    %v278 = vsel %vm177, %v275, 0
    %v281 = vsel %vm177, %v276, 0
    %283 = vmatprep.subr.bf16.mxu0 0
    %284 = vmatpush1.bf16.msra.mxu0 0
    %285 = vmatprep.subr.bf16.mxu0 0
    %286 = vmatpush1.bf16.msra.mxu0 0
    %287 = vmatprep.subr.bf16.mxu0 0
    %288 = vmatpush1.bf16.msra.mxu0 0
    %289 = vmatprep.subr.bf16.mxu0 0
    %290 = vmatpush1.bf16.msra.mxu0 0
    %291 = vmatprep.subr.bf16.mxu0 0
    %292 = vmatpush1.bf16.msra.mxu0 0
    %293 = vmatprep.subr.bf16.mxu0 0
    %294 = vmatpush1.bf16.msra.mxu0 0
    %295 = vmatprep.subr.bf16.mxu0 0
    %296 = vmatpush1.bf16.msra.mxu0 %v238
    %297 = vmatprep.subr.bf16.mxu0 0
    %298 = vmatpush1.bf16.msra.mxu0 %v237
    %299 = vmatprep.subr.bf16.mxu0 0
    %300 = vmatpush2.bf16.msra.mxu0 0
    %301 = vmatprep.subr.bf16.mxu0 0
    %302 = vmatpush2.bf16.msra.mxu0 0
    %303 = vmatprep.subr.bf16.mxu0 0
    %304 = vmatpush2.bf16.msra.mxu0 0
    %305 = vmatprep.subr.bf16.mxu0 0
    %306 = vmatpush2.bf16.msra.mxu0 0
    %307 = vmatprep.subr.bf16.mxu0 0
    %308 = vmatpush2.bf16.msra.mxu0 0
    %309 = vmatprep.subr.bf16.mxu0 0
    %310 = vmatpush2.bf16.msra.mxu0 0
    %311 = vmatprep.subr.bf16.mxu0 0
    %312 = vmatpush2.bf16.msra.mxu0 0
    %313 = vmatprep.subr.bf16.mxu0 0
    %314 = vmatpush2.bf16.msra.mxu0 0
    %315 = vmatprep.mubr.bf16.mxu0 0
    %316 = vmatmul.mubr.bf16.gmra.mxu0 %v278
    %v317 = vpop.f32.mrf.mxu0
    %v318 = vadd.f32 %v250, %v317
    %v319 = vpop.f32.mrf.mxu0
    %v320 = vpop.f32.mrf.mxu0
    %v321 = vadd.f32 %v255, %v320
    %v322 = vpop.f32.mrf.mxu0
    %323 = vmatprep.mubr.bf16.mxu0 0
    %324 = vmatmul.mubr.bf16.gmra.mxu0 %v281
    %v325 = vpop.f32.mrf.mxu0
    %v326 = vadd.f32 %v260, %v325
    %v327 = vpop.f32.mrf.mxu0
    %v328 = vpop.f32.mrf.mxu0
    %v329 = vadd.f32 %v265, %v328
    %v330 = vpop.f32.mrf.mxu0
    %331 = vdwg.mxu0
    %v332 = vmax.f32 %v318, 0.0
    %v333 = vmax.f32 %v321, 0.0
    %v334 = vmax.f32 %v326, 0.0
    %v335 = vmax.f32 %v329, 0.0
    %v336 = vpack.c.bf16 %v333, %v332
    %v337 = vpack.c.bf16 %v335, %v334
    %v338 = vld [vmem:[%s7] sm:$0xf]
    %v339 = vld [vmem:[%s8] sm:$0xff]
    %341 = vset.pattern.permute.xlu0 0
    %342 = vperm.xlu0 %341, %v339
    %v343 = vpop.permute.xlu0 %342
    %v346 = vsel %vm177, %v338, 0
    %348 = vmatprep.subr.bf16.mxu0 0
    %349 = vmatpush1.bf16.msra.mxu0 0
    %350 = vmatprep.subr.bf16.mxu0 0
    %351 = vmatpush1.bf16.msra.mxu0 0
    %352 = vmatprep.subr.bf16.mxu0 0
    %353 = vmatpush1.bf16.msra.mxu0 0
    %354 = vmatprep.subr.bf16.mxu0 0
    %355 = vmatpush1.bf16.msra.mxu0 0
    %356 = vmatprep.subr.bf16.mxu0 0
    %357 = vmatpush1.bf16.msra.mxu0 0
    %358 = vmatprep.subr.bf16.mxu0 0
    %359 = vmatpush1.bf16.msra.mxu0 0
    %360 = vmatprep.subr.bf16.mxu0 0
    %361 = vmatpush1.bf16.msra.mxu0 %v337
    %362 = vmatprep.subr.bf16.mxu0 0
    %363 = vmatpush1.bf16.msra.mxu0 %v336
    %364 = vmatprep.subr.bf16.mxu0 0
    %365 = vmatpush2.bf16.msra.mxu0 0
    %366 = vmatprep.subr.bf16.mxu0 0
    %367 = vmatpush2.bf16.msra.mxu0 0
    %368 = vmatprep.subr.bf16.mxu0 0
    %369 = vmatpush2.bf16.msra.mxu0 0
    %370 = vmatprep.subr.bf16.mxu0 0
    %371 = vmatpush2.bf16.msra.mxu0 0
    %372 = vmatprep.subr.bf16.mxu0 0
    %373 = vmatpush2.bf16.msra.mxu0 0
    %374 = vmatprep.subr.bf16.mxu0 0
    %375 = vmatpush2.bf16.msra.mxu0 0
    %376 = vmatprep.subr.bf16.mxu0 0
    %377 = vmatpush2.bf16.msra.mxu0 0
    %378 = vmatprep.subr.bf16.mxu0 0
    %379 = vmatpush2.bf16.msra.mxu0 0
    %380 = vmatprep.mubr.bf16.mxu0 0
    %381 = vmatmul.mubr.bf16.gmra.mxu0 %v346
    %v382 = vpop.f32.mrf.mxu0
    %v383 = vadd.f32 %v343, %v382
    %v384 = vpop.f32.mrf.mxu0
    %v385 = vpop.f32.mrf.mxu0
    %v386 = vpop.f32.mrf.mxu0
    %387 = vdwg.mxu0
    %vm388 = vcmask 64512
    %389 = vst.msk [vmem:[#allocation2] sm:$0xff] %vm388, %v383
    // Predicated region
    $region38: #{tpu_custom_call.1} parent=1 // pred_check
      _
    $region39: #{tpu_custom_call.1} parent=1 // pred_check_branch
      %391 = sbr.rel (0) target = $region41
    $region40: #{tpu_custom_call.1} parent=1 // pred_region
      %s393 = ssub.s32 128, 128
      %394 = vsyncadd [#allocation3], %s393
      %s396 = sshll.u32 [#allocation2], 4
      %s397 = int_to_ptr.vmem [resolvable:$true] %s396
      %399 = dma.vmem_to_hbm [thread:$0]  %s397, 128, %s9, [#allocation3]
    $region41: #{tpu_custom_call.1} parent=1 // pred_fallthru
      _
    // Predicated region
    $region42: #{tpu_custom_call.1} parent=1 // pred_check
      _
    $region43: #{tpu_custom_call.1} parent=1 // pred_check_branch
      %401 = sbr.rel (0) target = $region45
    $region44: #{tpu_custom_call.1} parent=1 // pred_region
      %402 = dma.done [#allocation3], 128
    $region45: #{tpu_custom_call.1} parent=1 // pred_fallthru
      _
    %403 = vsyncpa [#allocation3], 1

</llo_original>
